<compile_context>
chip_gen: v7x
topology: tpu7x:2x2x1
jax: 0.10.0
libtpu: 0.0.40
codegen_flags: <defaults>
</compile_context>

<pallas_src>
import math
from functools import partial

import jax
import jax.numpy as jnp
from jax.experimental import pallas as pl
from jax.experimental.pallas import tpu as pltpu


def _round_up(x, m):
    return ((x + m - 1) // m) * m


def _atom_encoder_kernel(cat_dims, offsets, num_feat, pack,
                         x_ref, emb_tab_ref, lin_tab_ref, b_ref, out_ref):
    """One grid step over `tile_p` packed rows (`pack` atoms per row).

    x_ref       : (tile_p, pack*num_feat)        f32  packed raw features
    emb_tab_ref : (pack*total_cat, pack*emb_dim) f32  block-diag embedding table
    lin_tab_ref : (pack*num_feat,  pack*emb_dim) f32  block-diag [zeros; linear_w]
    b_ref       : (1, pack*emb_dim)              f32  bias tiled `pack` times
    out_ref     : (tile_p, pack*emb_dim)         f32
    """
    num_cat = len(cat_dims)
    total_cat = sum(cat_dims)
    n = x_ref.shape[0]
    k1 = pack * total_cat

    x = x_ref[...]                                               # (tile_p, pack*F)
    cols = jax.lax.broadcasted_iota(jnp.int32, (n, k1), 1)       # hoisted, once

    # Per-lane target index: lane  p*total_cat + offsets[i] + c  is hot iff
    # atom p's categorical feature i equals c.  Lane ranges are disjoint and
    # ascending, so pack*num_cat-1 selects (constant lane masks) followed by
    # ONE compare + ONE int->f32 cast produce the multi-hot LHS.
    target = None
    for p in range(pack):
        base = p * total_cat
        for i in range(num_cat):
            col = p * num_feat + i
            # float -> int via +0.5 truncation (indices are non-negative ints).
            idx = (x[:, col:col + 1] + 0.5).astype(jnp.int32) + (base + offsets[i])
            if target is None:
                target = jnp.broadcast_to(idx, (n, k1))
            else:
                target = jnp.where(cols >= base + offsets[i], idx, target)
    one_hot = (cols == target).astype(jnp.float32)               # (tile_p, k1)

    # Two MXU dots (K is tiny, MXU ~1% utilized, so both are essentially free):
    #   1) multi-hot @ block-diag embedding table  == sum_i Embedding_i(x[:,i])
    #   2) raw packed features @ block-diag [0; W] == linear(scalars)
    #      (categorical columns multiply zero rows -> no slicing / scatter).
    acc = jnp.dot(one_hot, emb_tab_ref[...], preferred_element_type=jnp.float32)
    acc = acc + jnp.dot(x, lin_tab_ref[...], preferred_element_type=jnp.float32)
    out_ref[...] = acc + b_ref[...]


def atom_encoder_forward(x, params, tile_atoms=8192):
    """x: (N, num_cat + num_scalar) float. Returns (N, emb_dim) float32."""
    cat_dims = params["cat_dims"]          # static python tuple
    offsets = params["offsets"]            # static python tuple
    num_scalar = params["num_scalar"]
    emb_dim = params["emb_dim"]
    pack = params["pack"]
    num_cat = len(cat_dims)
    num_feat = num_cat + num_scalar
    total_cat = sum(cat_dims)

    n, nf = x.shape
    assert nf == num_feat, f"Invalid input shape: {nf} != {num_cat} + {num_scalar}"
    x = x.astype(jnp.float32)

    # Atoms per grid step: multiple of pack*8 so the packed tile has >=8 sublanes.
    quant = pack * 8
    tile_atoms = max(quant, (int(tile_atoms) // quant) * quant)
    # Keep >= 2 grid steps when N allows it (megacore sharding on v7x).
    if n > 2 * quant:
        tile_atoms = min(tile_atoms, _round_up(-(-n // 2), quant))
    tile_atoms = min(tile_atoms, _round_up(n, quant))
    n_pad = _round_up(n, tile_atoms)

    if n_pad != n:
        # Padded rows read index 0 of each table (valid, no OOB); sliced away below.
        x = jnp.pad(x, ((0, n_pad - n), (0, 0)))

    # Pack `pack` atoms per 128-lane row — both reshapes are free (row-major).
    rows = n_pad // pack
    tile_p = tile_atoms // pack
    x_packed = x.reshape(rows, pack * num_feat)

    kernel = partial(_atom_encoder_kernel, cat_dims, offsets, num_feat, pack)
    out = pl.pallas_call(
        kernel,
        out_shape=jax.ShapeDtypeStruct((rows, pack * emb_dim), jnp.float32),
        grid=(rows // tile_p,),
        in_specs=[
            # per-row packed input, tiled + auto-pipelined
            pl.BlockSpec((tile_p, pack * num_feat), lambda i: (i, 0)),
            # block-diagonal tables + bias: resident (constant block index)
            pl.BlockSpec((pack * total_cat, pack * emb_dim), lambda i: (0, 0)),
            pl.BlockSpec((pack * num_feat, pack * emb_dim), lambda i: (0, 0)),
            pl.BlockSpec((1, pack * emb_dim), lambda i: (0, 0)),
        ],
        out_specs=pl.BlockSpec((tile_p, pack * emb_dim), lambda i: (i, 0)),
        compiler_params=pltpu.CompilerParams(
            dimension_semantics=("parallel",),   # shard row-tiles across TCs (v7x)
        ),
    )(x_packed, params["emb_tab_packed"], params["lin_tab_packed"],
      params["bias_packed"])

    return out.reshape(n_pad, emb_dim)[:n]


def init_atom_encoder_params(key, emb_dim, feature_dims, sigma_embed_dim):
    cat_dims = tuple(int(d) for d in feature_dims[0])
    num_cat = len(cat_dims)
    num_scalar = int(feature_dims[1]) + int(sigma_embed_dim)
    total_cat = sum(cat_dims)
    offsets = tuple(sum(cat_dims[:i]) for i in range(num_cat))

    keys = jax.random.split(key, num_cat + 2)

    # Embedding tables, xavier_uniform like torch.nn.init.xavier_uniform_.
    tables = []
    for i, dim in enumerate(cat_dims):
        bound = math.sqrt(6.0 / (dim + emb_dim))
        tables.append(jax.random.uniform(
            keys[i], (dim, emb_dim), jnp.float32, minval=-bound, maxval=bound))
    emb_concat = jnp.concatenate(tables, axis=0)           # (total_cat, emb_dim)

    # nn.Linear default init: U(-1/sqrt(fan_in), 1/sqrt(fan_in)).
    bound = 1.0 / math.sqrt(num_scalar)
    linear_w = jax.random.uniform(
        keys[-2], (num_scalar, emb_dim), jnp.float32, minval=-bound, maxval=bound)
    linear_b = jax.random.uniform(
        keys[-1], (emb_dim,), jnp.float32, minval=-bound, maxval=bound)

    # Pack factor: atoms sharing one 128-lane output row.
    pack = 128 // emb_dim if (emb_dim < 128 and 128 % emb_dim == 0) else 1

    # Block-diagonal packed RHS tables + tiled bias, built once at init.
    lin_full = jnp.concatenate(
        [jnp.zeros((num_cat, emb_dim), jnp.float32), linear_w], axis=0)
    emb_tab_packed = jax.scipy.linalg.block_diag(*([emb_concat] * pack))
    lin_tab_packed = jax.scipy.linalg.block_diag(*([lin_full] * pack))
    bias_packed = jnp.tile(linear_b.reshape(1, emb_dim), (1, pack))

    return {
        # kernel inputs
        "emb_tab_packed": emb_tab_packed,    # (pack*total_cat, pack*emb_dim)
        "lin_tab_packed": lin_tab_packed,    # (pack*num_feat,  pack*emb_dim)
        "bias_packed": bias_packed,          # (1, pack*emb_dim)
        # unpacked weights (reference only)
        "emb_concat": emb_concat,
        "linear_w": linear_w,
        "linear_b": linear_b,
        # static config baked into the kernel as Python constants
        "cat_dims": cat_dims,
        "offsets": offsets,
        "num_scalar": num_scalar,
        "emb_dim": int(emb_dim),
        "pack": int(pack),
    }


def atom_encoder_reference(x, params):
    """Pure-JAX reference matching the PyTorch forward."""
    cat_dims = params["cat_dims"]
    num_cat = len(cat_dims)
    offsets = jnp.array(params["offsets"], jnp.int32)
    idx = jnp.round(x[:, :num_cat]).astype(jnp.int32) + offsets[None, :]
    emb = params["emb_concat"][idx].sum(axis=1)                   # (N, emb_dim)
    lin = x[:, num_cat:].astype(jnp.float32) @ params["linear_w"] + params["linear_b"]
    return emb + lin


if __name__ == "__main__":
    emb_dim = 32
    feature_dims = ([5, 3, 7], 4)   # 3 categorical features, 4 scalar features
    sigma_embed_dim = 2
    num_cat = len(feature_dims[0])
    num_scalar = feature_dims[1] + sigma_embed_dim
    n_atoms = 100                   # deliberately not a multiple of the packed tile

    key = jax.random.PRNGKey(0)
    k_param, k_cat, k_sca = jax.random.split(key, 3)
    params = init_atom_encoder_params(k_param, emb_dim, feature_dims,
                                      sigma_embed_dim)

    # Build input like the PyTorch module expects: first num_cat columns hold
    # (float-encoded) category indices, remaining columns are scalar features.
    cat_cols = []
    ks = jax.random.split(k_cat, num_cat)
    for i, dim in enumerate(feature_dims[0]):
        cat_cols.append(
            jax.random.randint(ks[i], (n_atoms, 1), 0, dim).astype(jnp.float32))
    scalar_cols = jax.random.normal(k_sca, (n_atoms, num_scalar), jnp.float32)
    x = jnp.concatenate(cat_cols + [scalar_cols], axis=1)   # (N, 9)

    # Small tile here so the test exercises a multi-step grid + row padding;
    # production default is tile_atoms=8192.
    out = atom_encoder_forward(x, params, tile_atoms=64)
    out = jax.block_until_ready(out)

    ref = atom_encoder_reference(x, params)
    assert out.shape == (n_atoms, emb_dim)
    assert jnp.allclose(out, ref, atol=1e-5, rtol=1e-5), "mismatch vs JAX reference"

    print("KERNEL_OK")
</pallas_src>

<mosaic_0001>
module attributes {stable_mosaic.version = 11 : i64} {
  func.func @_atom_encoder_kernel(%arg0: i32, %arg1: memref<16x36xf32, #tpu.memory_space<vmem>>, %arg2: memref<60x128xf32, #tpu.memory_space<vmem>>, %arg3: memref<36x128xf32, #tpu.memory_space<vmem>>, %arg4: memref<1x128xf32, #tpu.memory_space<vmem>>, %arg5: memref<16x128xf32, #tpu.memory_space<vmem>>) attributes {dimension_semantics = [#tpu.dimension_semantics<parallel>], iteration_bounds = array<i64: 2>, scalar_prefetch = 0 : i64, scratch_operands = 0 : i64, tpu.core_type = #tpu.core_type<tc>, window_params = [{transform_indices = @transform_0, window_bounds = array<i64: 16, 36>}, {pipeline_mode = #tpu.pipeline_mode<synchronous>, transform_indices = @transform_1, window_bounds = array<i64: 60, 128>}, {pipeline_mode = #tpu.pipeline_mode<synchronous>, transform_indices = @transform_2, window_bounds = array<i64: 36, 128>}, {pipeline_mode = #tpu.pipeline_mode<synchronous>, transform_indices = @transform_3, window_bounds = array<i64: 1, 128>}, {transform_indices = @transform_4, window_bounds = array<i64: 16, 128>}]} {
    %c0 = arith.constant 0 : index
    %c0_0 = arith.constant 0 : index
    %0 = vector.load %arg1[%c0, %c0_0] : memref<16x36xf32, #tpu.memory_space<vmem>>, vector<16x36xf32>
    %1 = tpu.iota {dimensions = array<i32: 1>} : vector<16x60xi32>
    %2 = vector.extract_strided_slice %0 {offsets = [0, 0], sizes = [16, 1], strides = [1, 1]} : vector<16x36xf32> to vector<16x1xf32>
    %cst = arith.constant 5.000000e-01 : f32
    %3 = vector.broadcast %cst : f32 to vector<16x1xf32>
    %4 = arith.addf %2, %3 : vector<16x1xf32>
    %5 = arith.fptosi %4 : vector<16x1xf32> to vector<16x1xi32>
    %c0_i32 = arith.constant 0 : i32
    %6 = vector.broadcast %c0_i32 : i32 to vector<16x1xi32>
    %7 = arith.addi %5, %6 : vector<16x1xi32>
    %8 = vector.shape_cast %7 : vector<16x1xi32> to vector<16x1xi32>
    %9 = vector.broadcast %8 : vector<16x1xi32> to vector<16x60xi32>
    %10 = vector.extract_strided_slice %0 {offsets = [0, 1], sizes = [16, 1], strides = [1, 1]} : vector<16x36xf32> to vector<16x1xf32>
    %cst_1 = arith.constant 5.000000e-01 : f32
    %11 = vector.broadcast %cst_1 : f32 to vector<16x1xf32>
    %12 = arith.addf %10, %11 : vector<16x1xf32>
    %13 = arith.fptosi %12 : vector<16x1xf32> to vector<16x1xi32>
    %c5_i32 = arith.constant 5 : i32
    %14 = vector.broadcast %c5_i32 : i32 to vector<16x1xi32>
    %15 = arith.addi %13, %14 : vector<16x1xi32>
    %c5_i32_2 = arith.constant 5 : i32
    %16 = vector.broadcast %c5_i32_2 : i32 to vector<16x60xi32>
    %17 = arith.cmpi sge, %1, %16 : vector<16x60xi32>
    %18 = vector.shape_cast %15 : vector<16x1xi32> to vector<16x1xi32>
    %19 = vector.broadcast %18 : vector<16x1xi32> to vector<16x60xi32>
    %20 = arith.select %17, %19, %9 : vector<16x60xi1>, vector<16x60xi32>
    %21 = vector.extract_strided_slice %0 {offsets = [0, 2], sizes = [16, 1], strides = [1, 1]} : vector<16x36xf32> to vector<16x1xf32>
    %cst_3 = arith.constant 5.000000e-01 : f32
    %22 = vector.broadcast %cst_3 : f32 to vector<16x1xf32>
    %23 = arith.addf %21, %22 : vector<16x1xf32>
    %24 = arith.fptosi %23 : vector<16x1xf32> to vector<16x1xi32>
    %c8_i32 = arith.constant 8 : i32
    %25 = vector.broadcast %c8_i32 : i32 to vector<16x1xi32>
    %26 = arith.addi %24, %25 : vector<16x1xi32>
    %c8_i32_4 = arith.constant 8 : i32
    %27 = vector.broadcast %c8_i32_4 : i32 to vector<16x60xi32>
    %28 = arith.cmpi sge, %1, %27 : vector<16x60xi32>
    %29 = vector.shape_cast %26 : vector<16x1xi32> to vector<16x1xi32>
    %30 = vector.broadcast %29 : vector<16x1xi32> to vector<16x60xi32>
    %31 = arith.select %28, %30, %20 : vector<16x60xi1>, vector<16x60xi32>
    %32 = vector.extract_strided_slice %0 {offsets = [0, 9], sizes = [16, 1], strides = [1, 1]} : vector<16x36xf32> to vector<16x1xf32>
    %cst_5 = arith.constant 5.000000e-01 : f32
    %33 = vector.broadcast %cst_5 : f32 to vector<16x1xf32>
    %34 = arith.addf %32, %33 : vector<16x1xf32>
    %35 = arith.fptosi %34 : vector<16x1xf32> to vector<16x1xi32>
    %c15_i32 = arith.constant 15 : i32
    %36 = vector.broadcast %c15_i32 : i32 to vector<16x1xi32>
    %37 = arith.addi %35, %36 : vector<16x1xi32>
    %c15_i32_6 = arith.constant 15 : i32
    %38 = vector.broadcast %c15_i32_6 : i32 to vector<16x60xi32>
    %39 = arith.cmpi sge, %1, %38 : vector<16x60xi32>
    %40 = vector.shape_cast %37 : vector<16x1xi32> to vector<16x1xi32>
    %41 = vector.broadcast %40 : vector<16x1xi32> to vector<16x60xi32>
    %42 = arith.select %39, %41, %31 : vector<16x60xi1>, vector<16x60xi32>
    %43 = vector.extract_strided_slice %0 {offsets = [0, 10], sizes = [16, 1], strides = [1, 1]} : vector<16x36xf32> to vector<16x1xf32>
    %cst_7 = arith.constant 5.000000e-01 : f32
    %44 = vector.broadcast %cst_7 : f32 to vector<16x1xf32>
    %45 = arith.addf %43, %44 : vector<16x1xf32>
    %46 = arith.fptosi %45 : vector<16x1xf32> to vector<16x1xi32>
    %c20_i32 = arith.constant 20 : i32
    %47 = vector.broadcast %c20_i32 : i32 to vector<16x1xi32>
    %48 = arith.addi %46, %47 : vector<16x1xi32>
    %c20_i32_8 = arith.constant 20 : i32
    %49 = vector.broadcast %c20_i32_8 : i32 to vector<16x60xi32>
    %50 = arith.cmpi sge, %1, %49 : vector<16x60xi32>
    %51 = vector.shape_cast %48 : vector<16x1xi32> to vector<16x1xi32>
    %52 = vector.broadcast %51 : vector<16x1xi32> to vector<16x60xi32>
    %53 = arith.select %50, %52, %42 : vector<16x60xi1>, vector<16x60xi32>
    %54 = vector.extract_strided_slice %0 {offsets = [0, 11], sizes = [16, 1], strides = [1, 1]} : vector<16x36xf32> to vector<16x1xf32>
    %cst_9 = arith.constant 5.000000e-01 : f32
    %55 = vector.broadcast %cst_9 : f32 to vector<16x1xf32>
    %56 = arith.addf %54, %55 : vector<16x1xf32>
    %57 = arith.fptosi %56 : vector<16x1xf32> to vector<16x1xi32>
    %c23_i32 = arith.constant 23 : i32
    %58 = vector.broadcast %c23_i32 : i32 to vector<16x1xi32>
    %59 = arith.addi %57, %58 : vector<16x1xi32>
    %c23_i32_10 = arith.constant 23 : i32
    %60 = vector.broadcast %c23_i32_10 : i32 to vector<16x60xi32>
    %61 = arith.cmpi sge, %1, %60 : vector<16x60xi32>
    %62 = vector.shape_cast %59 : vector<16x1xi32> to vector<16x1xi32>
    %63 = vector.broadcast %62 : vector<16x1xi32> to vector<16x60xi32>
    %64 = arith.select %61, %63, %53 : vector<16x60xi1>, vector<16x60xi32>
    %65 = vector.extract_strided_slice %0 {offsets = [0, 18], sizes = [16, 1], strides = [1, 1]} : vector<16x36xf32> to vector<16x1xf32>
    %cst_11 = arith.constant 5.000000e-01 : f32
    %66 = vector.broadcast %cst_11 : f32 to vector<16x1xf32>
    %67 = arith.addf %65, %66 : vector<16x1xf32>
    %68 = arith.fptosi %67 : vector<16x1xf32> to vector<16x1xi32>
    %c30_i32 = arith.constant 30 : i32
    %69 = vector.broadcast %c30_i32 : i32 to vector<16x1xi32>
    %70 = arith.addi %68, %69 : vector<16x1xi32>
    %c30_i32_12 = arith.constant 30 : i32
    %71 = vector.broadcast %c30_i32_12 : i32 to vector<16x60xi32>
    %72 = arith.cmpi sge, %1, %71 : vector<16x60xi32>
    %73 = vector.shape_cast %70 : vector<16x1xi32> to vector<16x1xi32>
    %74 = vector.broadcast %73 : vector<16x1xi32> to vector<16x60xi32>
    %75 = arith.select %72, %74, %64 : vector<16x60xi1>, vector<16x60xi32>
    %76 = vector.extract_strided_slice %0 {offsets = [0, 19], sizes = [16, 1], strides = [1, 1]} : vector<16x36xf32> to vector<16x1xf32>
    %cst_13 = arith.constant 5.000000e-01 : f32
    %77 = vector.broadcast %cst_13 : f32 to vector<16x1xf32>
    %78 = arith.addf %76, %77 : vector<16x1xf32>
    %79 = arith.fptosi %78 : vector<16x1xf32> to vector<16x1xi32>
    %c35_i32 = arith.constant 35 : i32
    %80 = vector.broadcast %c35_i32 : i32 to vector<16x1xi32>
    %81 = arith.addi %79, %80 : vector<16x1xi32>
    %c35_i32_14 = arith.constant 35 : i32
    %82 = vector.broadcast %c35_i32_14 : i32 to vector<16x60xi32>
    %83 = arith.cmpi sge, %1, %82 : vector<16x60xi32>
    %84 = vector.shape_cast %81 : vector<16x1xi32> to vector<16x1xi32>
    %85 = vector.broadcast %84 : vector<16x1xi32> to vector<16x60xi32>
    %86 = arith.select %83, %85, %75 : vector<16x60xi1>, vector<16x60xi32>
    %87 = vector.extract_strided_slice %0 {offsets = [0, 20], sizes = [16, 1], strides = [1, 1]} : vector<16x36xf32> to vector<16x1xf32>
    %cst_15 = arith.constant 5.000000e-01 : f32
    %88 = vector.broadcast %cst_15 : f32 to vector<16x1xf32>
    %89 = arith.addf %87, %88 : vector<16x1xf32>
    %90 = arith.fptosi %89 : vector<16x1xf32> to vector<16x1xi32>
    %c38_i32 = arith.constant 38 : i32
    %91 = vector.broadcast %c38_i32 : i32 to vector<16x1xi32>
    %92 = arith.addi %90, %91 : vector<16x1xi32>
    %c38_i32_16 = arith.constant 38 : i32
    %93 = vector.broadcast %c38_i32_16 : i32 to vector<16x60xi32>
    %94 = arith.cmpi sge, %1, %93 : vector<16x60xi32>
    %95 = vector.shape_cast %92 : vector<16x1xi32> to vector<16x1xi32>
    %96 = vector.broadcast %95 : vector<16x1xi32> to vector<16x60xi32>
    %97 = arith.select %94, %96, %86 : vector<16x60xi1>, vector<16x60xi32>
    %98 = vector.extract_strided_slice %0 {offsets = [0, 27], sizes = [16, 1], strides = [1, 1]} : vector<16x36xf32> to vector<16x1xf32>
    %cst_17 = arith.constant 5.000000e-01 : f32
    %99 = vector.broadcast %cst_17 : f32 to vector<16x1xf32>
    %100 = arith.addf %98, %99 : vector<16x1xf32>
    %101 = arith.fptosi %100 : vector<16x1xf32> to vector<16x1xi32>
    %c45_i32 = arith.constant 45 : i32
    %102 = vector.broadcast %c45_i32 : i32 to vector<16x1xi32>
    %103 = arith.addi %101, %102 : vector<16x1xi32>
    %c45_i32_18 = arith.constant 45 : i32
    %104 = vector.broadcast %c45_i32_18 : i32 to vector<16x60xi32>
    %105 = arith.cmpi sge, %1, %104 : vector<16x60xi32>
    %106 = vector.shape_cast %103 : vector<16x1xi32> to vector<16x1xi32>
    %107 = vector.broadcast %106 : vector<16x1xi32> to vector<16x60xi32>
    %108 = arith.select %105, %107, %97 : vector<16x60xi1>, vector<16x60xi32>
    %109 = vector.extract_strided_slice %0 {offsets = [0, 28], sizes = [16, 1], strides = [1, 1]} : vector<16x36xf32> to vector<16x1xf32>
    %cst_19 = arith.constant 5.000000e-01 : f32
    %110 = vector.broadcast %cst_19 : f32 to vector<16x1xf32>
    %111 = arith.addf %109, %110 : vector<16x1xf32>
    %112 = arith.fptosi %111 : vector<16x1xf32> to vector<16x1xi32>
    %c50_i32 = arith.constant 50 : i32
    %113 = vector.broadcast %c50_i32 : i32 to vector<16x1xi32>
    %114 = arith.addi %112, %113 : vector<16x1xi32>
    %c50_i32_20 = arith.constant 50 : i32
    %115 = vector.broadcast %c50_i32_20 : i32 to vector<16x60xi32>
    %116 = arith.cmpi sge, %1, %115 : vector<16x60xi32>
    %117 = vector.shape_cast %114 : vector<16x1xi32> to vector<16x1xi32>
    %118 = vector.broadcast %117 : vector<16x1xi32> to vector<16x60xi32>
    %119 = arith.select %116, %118, %108 : vector<16x60xi1>, vector<16x60xi32>
    %120 = vector.extract_strided_slice %0 {offsets = [0, 29], sizes = [16, 1], strides = [1, 1]} : vector<16x36xf32> to vector<16x1xf32>
    %cst_21 = arith.constant 5.000000e-01 : f32
    %121 = vector.broadcast %cst_21 : f32 to vector<16x1xf32>
    %122 = arith.addf %120, %121 : vector<16x1xf32>
    %123 = arith.fptosi %122 : vector<16x1xf32> to vector<16x1xi32>
    %c53_i32 = arith.constant 53 : i32
    %124 = vector.broadcast %c53_i32 : i32 to vector<16x1xi32>
    %125 = arith.addi %123, %124 : vector<16x1xi32>
    %c53_i32_22 = arith.constant 53 : i32
    %126 = vector.broadcast %c53_i32_22 : i32 to vector<16x60xi32>
    %127 = arith.cmpi sge, %1, %126 : vector<16x60xi32>
    %128 = vector.shape_cast %125 : vector<16x1xi32> to vector<16x1xi32>
    %129 = vector.broadcast %128 : vector<16x1xi32> to vector<16x60xi32>
    %130 = arith.select %127, %129, %119 : vector<16x60xi1>, vector<16x60xi32>
    %131 = arith.cmpi eq, %1, %130 : vector<16x60xi32>
    %132 = arith.extui %131 : vector<16x60xi1> to vector<16x60xi32>
    %133 = arith.sitofp %132 : vector<16x60xi32> to vector<16x60xf32>
    %c0_23 = arith.constant 0 : index
    %c0_24 = arith.constant 0 : index
    %134 = vector.load %arg2[%c0_23, %c0_24] : memref<60x128xf32, #tpu.memory_space<vmem>>, vector<60x128xf32>
    %cst_25 = arith.constant dense<0.000000e+00> : vector<16x128xf32>
    %135 = tpu.matmul %133, %134, %cst_25 {dimension_numbers = #tpu.dot_dimension_numbers<[1], [0], [0], [1], [0, 0, 1, 1], [], []>} : vector<16x60xf32>, vector<60x128xf32>, vector<16x128xf32> -> vector<16x128xf32>
    %c0_26 = arith.constant 0 : index
    %c0_27 = arith.constant 0 : index
    %136 = vector.load %arg3[%c0_26, %c0_27] : memref<36x128xf32, #tpu.memory_space<vmem>>, vector<36x128xf32>
    %cst_28 = arith.constant dense<0.000000e+00> : vector<16x128xf32>
    %137 = tpu.matmul %0, %136, %cst_28 {dimension_numbers = #tpu.dot_dimension_numbers<[1], [0], [0], [1], [0, 0, 1, 1], [], []>} : vector<16x36xf32>, vector<36x128xf32>, vector<16x128xf32> -> vector<16x128xf32>
    %138 = arith.addf %135, %137 : vector<16x128xf32>
    %c0_29 = arith.constant 0 : index
    %c0_30 = arith.constant 0 : index
    %139 = vector.load %arg4[%c0_29, %c0_30] : memref<1x128xf32, #tpu.memory_space<vmem>>, vector<1x128xf32>
    %140 = vector.broadcast %139 : vector<1x128xf32> to vector<16x128xf32>
    %141 = arith.addf %138, %140 : vector<16x128xf32>
    %c0_31 = arith.constant 0 : index
    %c0_32 = arith.constant 0 : index
    %142 = vector.load %arg5[%c0_31, %c0_32] : memref<16x128xf32, #tpu.memory_space<vmem>>, vector<16x128xf32>
    tpu.vector_store %arg5[%c0_31, %c0_32], %141 {strides = array<i32>} : memref<16x128xf32, #tpu.memory_space<vmem>>, vector<16x128xf32>,
    return
  }
  func.func @transform_0(%arg0: i32) -> (i32, i32) {
    %c0_i32 = arith.constant 0 : i32
    %c0_i32_0 = arith.constant 0 : i32
    return %arg0, %c0_i32 : i32, i32
  }
  func.func @transform_1(%arg0: i32) -> (i32, i32) {
    %c0_i32 = arith.constant 0 : i32
    %c0_i32_0 = arith.constant 0 : i32
    %c0_i32_1 = arith.constant 0 : i32
    return %c0_i32, %c0_i32_0 : i32, i32
  }
  func.func @transform_2(%arg0: i32) -> (i32, i32) {
    %c0_i32 = arith.constant 0 : i32
    %c0_i32_0 = arith.constant 0 : i32
    %c0_i32_1 = arith.constant 0 : i32
    return %c0_i32, %c0_i32_0 : i32, i32
  }
  func.func @transform_3(%arg0: i32) -> (i32, i32) {
    %c0_i32 = arith.constant 0 : i32
    %c0_i32_0 = arith.constant 0 : i32
    %c0_i32_1 = arith.constant 0 : i32
    return %c0_i32, %c0_i32_0 : i32, i32
  }
  func.func @transform_4(%arg0: i32) -> (i32, i32) {
    %c0_i32 = arith.constant 0 : i32
    %c0_i32_0 = arith.constant 0 : i32
    return %arg0, %c0_i32 : i32, i32
  }
}

</mosaic_0001>

<llo_original>
// kernel: tpu_custom_call.1
$region0: #{tpu_custom_call.1}
  #allocation0 [shape = 'u32[]', space=smem, size = 0x4, offset = 0x4, fixed_abs, tag = 'smem constant byte address 0x4 - core index']
  #allocation1 [shape = 'u32[144,128]{1,0:T(1,128)}', space=vmem, size = 0x12000, scoped, tag = 'internal scratch']
  %s0 = inlined_call_operand.hbm [shape: f32[32,36], index: 0, kind: input, shape index: {}]
  %s1 = inlined_call_operand.hbm [shape: f32[60,128], index: 1, kind: input, shape index: {}]
  %s2 = inlined_call_operand.hbm [shape: f32[36,128], index: 2, kind: input, shape index: {}]
  %s3 = inlined_call_operand.vmem [shape: f32[1,128], index: 3, kind: input, shape index: {}]
  %s4 = inlined_call_operand.hbm [shape: f32[32,128], index: 4, kind: output, shape index: {}]
  %s5 = sld [smem:[#allocation0]]
  $region61: #{tpu_custom_call.1} parent=0
    _
  %s7 = ssub.s32 1, %s5
  %s8 = scalar_select 0, %s7, %s5
  $region1: #{tpu_custom_call.1} parent=0
    #allocation2 [shape = 'u8[16384]{0}', space=vmem, size = 0x4000, scoped, tag = 'input window, operand 0']
    #allocation3 [shape = 's32[2]{0}', space=sflag, size = 0x8, scoped, tag = 'scoped memory for tpu_custom_call.1']
    #allocation4 [shape = 's32[2]{0}', space=sflag, size = 0x8, scoped, tag = 'scoped memory for tpu_custom_call.1']
    #allocation5 [shape = 'u8[32768]{0}', space=vmem, size = 0x8000, scoped, tag = 'input window, operand 1, single buffered']
    #allocation6 [shape = 's32[1]{0}', space=sflag, size = 0x4, scoped, tag = 'scoped memory for tpu_custom_call.1']
    #allocation7 [shape = 'u8[20480]{0}', space=vmem, size = 0x5000, scoped, tag = 'input window, operand 2, single buffered']
    #allocation8 [shape = 'u8[16384]{0}', space=vmem, size = 0x4000, scoped, tag = 'output window, operand 0']
    %9 = vsyncpa [#allocation3], 0
    %s10 = scalar_lea.sflag [#allocation3], 1
    %11 = vsyncpa %s10, 0
    %12 = vsyncpa [#allocation6], 0
    %13 = vsyncpa [#allocation4], 0
    %s14 = scalar_lea.sflag [#allocation4], 1
    %15 = vsyncpa %s14, 0
    loop: start=0, step=1, limit=4
    $region2: #{tpu_custom_call.1} parent=1 // loop_pre_header
      _
    $region3: #{tpu_custom_call.1} parent=1 // loop_header
      %s17 = sphi 0, %s21
      %p18 = scmp.ge.s32.totalorder %s17, 4
      %s27 = sphi 0, %s29
      %s30 = sphi 0, %s27
      %s31 = sphi 0, %s30
      %s47 = sphi 0, %s31
      %s51 = sphi 0, %s51
      %s53 = sphi 0, %s51
      %s54 = sphi 0, %s53
      %s68 = sphi 0, %s54
      %s72 = sphi 0, %s72
      %s74 = sphi 0, %s72
      %s75 = sphi 0, %s74
      %s89 = sphi 0, %s75
      %s93 = sphi 0, %s93
      %s95 = sphi 0, %s93
      %s96 = sphi 0, %s95
      %s110 = sphi 0, %s96
      %s116 = sphi 0, %s118
      %s119 = sphi 0, %s116
      %s120 = sphi 0, %s119
      %s136 = sphi 0, %s120
    $region4: #{tpu_custom_call.1} parent=1 // loop_header_branch
      %20 = sbr.rel (%p18) target = $region8
    $region5: #{tpu_custom_call.1} parent=1 // loop_body
      %s22 = ssub.s32 %s17, 1
      %s23 = ssub.s32 %s17, 2
      %s24 = sadd.s32 %s17, 1
      %s25 = ssub.s32 %s17, %s24
      %p26 = scmp.eq.s32.totalorder %s25, 0
      %s28 = sadd.s32 %s27, 1
      %s29 = scalar_select %p26, %s27, %s28
      %p32 = pneg %p26
      %p33 = scmp.eq.s32.totalorder %s17, 1
      %p34 = por %p32, %p33
      %p35 = scmp.ne.s32.totalorder %s27, %s30
      %p36 = scmp.eq.s32.totalorder %s17, 0
      %p37 = por %p35, %p36
      %p38 = scmp.ne.s32.totalorder %s27, %s30
      %p39 = scmp.eq.s32.totalorder %s22, 1
      %p40 = por %p38, %p39
      %p41 = scmp.ne.s32.totalorder %s30, %s31
      %p42 = scmp.eq.s32.totalorder %s22, 0
      %p43 = por %p41, %p42
      %p44 = scmp.ne.s32.totalorder %s30, %s31
      %p45 = scmp.eq.s32.totalorder %s23, 1
      %p46 = por %p44, %p45
      %p48 = scmp.ne.s32.totalorder %s31, %s47
      %p49 = scmp.eq.s32.totalorder %s23, 0
      %p50 = por %p48, %p49
      %s52 = sadd.s32 %s51, 1
      %p55 = scmp.eq.s32.totalorder %s17, 1
      %p56 = scmp.ne.s32.totalorder %s51, %s53
      %p57 = scmp.eq.s32.totalorder %s17, 0
      %p58 = por %p56, %p57
      %p59 = scmp.ne.s32.totalorder %s51, %s53
      %p60 = scmp.eq.s32.totalorder %s22, 1
      %p61 = por %p59, %p60
      %p62 = scmp.ne.s32.totalorder %s53, %s54
      %p63 = scmp.eq.s32.totalorder %s22, 0
      %p64 = por %p62, %p63
      %p65 = scmp.ne.s32.totalorder %s53, %s54
      %p66 = scmp.eq.s32.totalorder %s23, 1
      %p67 = por %p65, %p66
      %p69 = scmp.ne.s32.totalorder %s54, %s68
      %p70 = scmp.eq.s32.totalorder %s23, 0
      %p71 = por %p69, %p70
      %s73 = sadd.s32 %s72, 1
      %p76 = scmp.eq.s32.totalorder %s17, 1
      %p77 = scmp.ne.s32.totalorder %s72, %s74
      %p78 = scmp.eq.s32.totalorder %s17, 0
      %p79 = por %p77, %p78
      %p80 = scmp.ne.s32.totalorder %s72, %s74
      %p81 = scmp.eq.s32.totalorder %s22, 1
      %p82 = por %p80, %p81
      %p83 = scmp.ne.s32.totalorder %s74, %s75
      %p84 = scmp.eq.s32.totalorder %s22, 0
      %p85 = por %p83, %p84
      %p86 = scmp.ne.s32.totalorder %s74, %s75
      %p87 = scmp.eq.s32.totalorder %s23, 1
      %p88 = por %p86, %p87
      %p90 = scmp.ne.s32.totalorder %s75, %s89
      %p91 = scmp.eq.s32.totalorder %s23, 0
      %p92 = por %p90, %p91
      %s94 = sadd.s32 %s93, 1
      %p97 = scmp.eq.s32.totalorder %s17, 1
      %p98 = scmp.ne.s32.totalorder %s93, %s95
      %p99 = scmp.eq.s32.totalorder %s17, 0
      %p100 = por %p98, %p99
      %p101 = scmp.ne.s32.totalorder %s93, %s95
      %p102 = scmp.eq.s32.totalorder %s22, 1
      %p103 = por %p101, %p102
      %p104 = scmp.ne.s32.totalorder %s95, %s96
      %p105 = scmp.eq.s32.totalorder %s22, 0
      %p106 = por %p104, %p105
      %p107 = scmp.ne.s32.totalorder %s95, %s96
      %p108 = scmp.eq.s32.totalorder %s23, 1
      %p109 = por %p107, %p108
      %p111 = scmp.ne.s32.totalorder %s96, %s110
      %p112 = scmp.eq.s32.totalorder %s23, 0
      %p113 = por %p111, %p112
      %s114 = ssub.s32 %s17, %s24
      %p115 = scmp.eq.s32.totalorder %s114, 0
      %s117 = sadd.s32 %s116, 1
      %s118 = scalar_select %p115, %s116, %s117
      %p121 = pneg %p115
      %p122 = scmp.eq.s32.totalorder %s17, 1
      %p123 = por %p121, %p122
      %p124 = scmp.ne.s32.totalorder %s116, %s119
      %p125 = scmp.eq.s32.totalorder %s17, 0
      %p126 = por %p124, %p125
      %p127 = scmp.ne.s32.totalorder %s116, %s119
      %p128 = scmp.eq.s32.totalorder %s22, 1
      %p129 = por %p127, %p128
      %p130 = scmp.ne.s32.totalorder %s119, %s120
      %p131 = scmp.eq.s32.totalorder %s22, 0
      %p132 = por %p130, %p131
      %p133 = scmp.ne.s32.totalorder %s119, %s120
      %p134 = scmp.eq.s32.totalorder %s23, 1
      %p135 = por %p133, %p134
      %p137 = scmp.ne.s32.totalorder %s120, %s136
      %p138 = scmp.eq.s32.totalorder %s23, 0
      %p139 = por %p137, %p138
      %p140 = scmp.le.s32.totalorder 1, %s17
      %p141 = scmp.lt.s32.totalorder %s17, 3
      %p142 = pnand %p140, %p141
      %p143 = pneg %p142
      // Predicated region
      $region9: #{tpu_custom_call.1} parent=5 // pred_check
        _
      $region10: #{tpu_custom_call.1} parent=5 // pred_check_branch
        %145 = sbr.rel (%p142) target = $region12
      $region11: #{tpu_custom_call.1} parent=5 // pred_region
        %s146 = ssub.s32 %s17, 1
        // Predicated region
        $region13: #{tpu_custom_call.1} parent=11 // pred_check
          %p147 = pneg %p64
        $region14: #{tpu_custom_call.1} parent=11 // pred_check_branch
          %149 = sbr.rel (%p147) target = $region16
        $region15: #{tpu_custom_call.1} parent=11 // pred_region
          %s151 = ssub.s32 1024, 1024
          %152 = vsyncadd [#allocation6], %s151
          %s153 = sshll.u32 [#allocation5], 4
          %s154 = int_to_ptr.vmem [resolvable:$true] %s153
          %159 = dma.hbm_to_vmem [thread:$0]  %s1, 1024, %s154, [#allocation6], 128, 128, 8
        $region16: #{tpu_custom_call.1} parent=11 // pred_fallthru
          _
        // Predicated region
        $region17: #{tpu_custom_call.1} parent=11 // pred_check
          %p160 = pneg %p85
        $region18: #{tpu_custom_call.1} parent=11 // pred_check_branch
          %162 = sbr.rel (%p160) target = $region20
        $region19: #{tpu_custom_call.1} parent=11 // pred_region
          %s164 = ssub.s32 640, 640
          %165 = vsyncadd [#allocation6], %s164
          %s166 = sshll.u32 [#allocation7], 4
          %s167 = int_to_ptr.vmem [resolvable:$true] %s166
          %172 = dma.hbm_to_vmem [thread:$0]  %s2, 640, %s167, [#allocation6], 128, 128, 8
        $region20: #{tpu_custom_call.1} parent=11 // pred_fallthru
          _
        // Predicated region
        $region21: #{tpu_custom_call.1} parent=11 // pred_check
          %p173 = pneg %p106
        $region22: #{tpu_custom_call.1} parent=11 // pred_check_branch
          %175 = sbr.rel (%p173) target = $region24
        $region23: #{tpu_custom_call.1} parent=11 // pred_region
          _
        $region24: #{tpu_custom_call.1} parent=11 // pred_fallthru
          _
      $region12: #{tpu_custom_call.1} parent=5 // pred_fallthru
        _
      %p176 = scmp.lt.s32.totalorder %s17, 2
      // Predicated region
      $region25: #{tpu_custom_call.1} parent=5 // pred_check
        %p177 = pneg %p176
      $region26: #{tpu_custom_call.1} parent=5 // pred_check_branch
        %179 = sbr.rel (%p177) target = $region28
      $region27: #{tpu_custom_call.1} parent=5 // pred_region
        // Predicated region
        $region29: #{tpu_custom_call.1} parent=27 // pred_check
          %p180 = pneg %p37
        $region30: #{tpu_custom_call.1} parent=27 // pred_check_branch
          %182 = sbr.rel (%p180) target = $region32
        $region31: #{tpu_custom_call.1} parent=27 // pred_region
          %s183 = sand.u32 %s27, 1
          %s184 = scalar_lea.sflag [#allocation3], %s183
          %s185 = sand.u32 %s27, 1
          %s186 = smul.addr %s185, 16
          %s187 = scalar_lea.vmem [#allocation2], %s186
          %s188 = smul.u32 2, %s17
          %s190 = ssub.s32 256, 256
          %191 = vsyncadd %s184, %s190
          %s192 = smul.addr %s188, 128
          %s193 = scalar_lea.hbm %s0, %s192
          %s194 = sshll.u32 %s187, 4
          %s195 = int_to_ptr.vmem [resolvable:$true] %s194
          %200 = dma.hbm_to_vmem [thread:$0]  %s193, 256, %s195, %s184, 128, 128, 8
        $region32: #{tpu_custom_call.1} parent=27 // pred_fallthru
          _
      $region28: #{tpu_custom_call.1} parent=5 // pred_fallthru
        _
      %p201 = scmp.le.s32.totalorder 1, %s17
      %p202 = scmp.lt.s32.totalorder %s17, 3
      %p203 = pnand %p201, %p202
      %p204 = pneg %p203
      // Predicated region
      $region33: #{tpu_custom_call.1} parent=5 // pred_check
        _
      $region34: #{tpu_custom_call.1} parent=5 // pred_check_branch
        %206 = sbr.rel (%p203) target = $region36
      $region35: #{tpu_custom_call.1} parent=5 // pred_region
        %s207 = ssub.s32 %s17, 1
        %s208 = sand.u32 %s30, 1
        %s209 = scalar_lea.sflag [#allocation3], %s208
        %s210 = sand.u32 %s30, 1
        %s211 = smul.addr %s210, 16
        %s212 = scalar_lea.vmem [#allocation2], %s211
        // Predicated region
        $region37: #{tpu_custom_call.1} parent=35 // pred_check
          %p213 = pneg %p43
        $region38: #{tpu_custom_call.1} parent=35 // pred_check_branch
          %215 = sbr.rel (%p213) target = $region40
        $region39: #{tpu_custom_call.1} parent=35 // pred_region
          %216 = dma.done %s209, 256
        $region40: #{tpu_custom_call.1} parent=35 // pred_fallthru
          _
        // Predicated region
        $region41: #{tpu_custom_call.1} parent=35 // pred_check
          %p217 = pneg %p64
        $region42: #{tpu_custom_call.1} parent=35 // pred_check_branch
          %219 = sbr.rel (%p217) target = $region44
        $region43: #{tpu_custom_call.1} parent=35 // pred_region
          %220 = dma.done [#allocation6], 1024
        $region44: #{tpu_custom_call.1} parent=35 // pred_fallthru
          _
        // Predicated region
        $region45: #{tpu_custom_call.1} parent=35 // pred_check
          %p221 = pneg %p85
        $region46: #{tpu_custom_call.1} parent=35 // pred_check_branch
          %223 = sbr.rel (%p221) target = $region48
        $region47: #{tpu_custom_call.1} parent=35 // pred_region
          %224 = dma.done [#allocation6], 640
        $region48: #{tpu_custom_call.1} parent=35 // pred_fallthru
          _
        %s225 = sand.u32 %s30, 1
        %s226 = scalar_lea.sflag [#allocation3], %s225
        %s227 = sand.u32 %s30, 1
        %s228 = smul.addr %s227, 16
        %s229 = scalar_lea.vmem [#allocation2], %s228
        %p230 = pneg %p43
        %p231 = pneg %p40
        %p232 = pneg %p64
        %p233 = pneg %p61
        %p234 = pneg %p85
        %p235 = pneg %p82
        %p236 = pneg %p106
        %p237 = pneg %p103
        %p238 = pneg %p132
        %p239 = pneg %p129
        %s240 = sand.u32 %s119, 1
        %s241 = scalar_lea.sflag [#allocation4], %s240
        %s242 = sand.u32 %s119, 1
        %s243 = smul.addr %s242, 16
        %s244 = scalar_lea.vmem [#allocation8], %s243
        %s245 = smul.u32 2, %s22
        %s246 = smul.u32 2, %s22
        %v247 = vld [vmem:[%s212] sm:$0xff]
        %v248 = vld [vmem:[%s212 + $0x8] sm:$0xff]
        %v249 = vlaneseq
        %v250 = vand.u32 %v249, 127
        %v251 = vadd.f32 %v247, 0.5
        %v252 = vadd.f32 %v248, 0.5
        %v253 = vcvt.f32.s32.to.zero.pseudo %v251
        %v254 = vcvt.f32.s32.to.zero.pseudo %v252
        %255 = vset.pattern.permute.xlu0 0
        %256 = vperm.xlu0 %255, %v253
        %v257 = vpop.permute.xlu0 %256
        %258 = vset.pattern.permute.xlu0 0
        %259 = vperm.xlu0 %258, %v254
        %v260 = vpop.permute.xlu0 %259
        %v261 = vadd.s32 %v253, 5
        %v262 = vadd.s32 %v254, 5
        %vm263 = vcmp.ge.s32.totalorder %v250, 5
        %264 = vset.pattern.permute.xlu0 1
        %265 = vperm.xlu0 %264, %v261
        %v266 = vpop.permute.xlu0 %265
        %267 = vset.pattern.permute.xlu0 1
        %268 = vperm.xlu0 %267, %v262
        %v269 = vpop.permute.xlu0 %268
        %v270 = vsel %vm263, %v266, %v257
        %v271 = vsel %vm263, %v269, %v260
        %v272 = vadd.s32 %v253, 8
        %v273 = vadd.s32 %v254, 8
        %vm274 = vcmp.ge.s32.totalorder %v250, 8
        %275 = vset.pattern.permute.xlu0 2
        %276 = vperm.xlu0 %275, %v272
        %v277 = vpop.permute.xlu0 %276
        %278 = vset.pattern.permute.xlu0 2
        %279 = vperm.xlu0 %278, %v273
        %v280 = vpop.permute.xlu0 %279
        %v281 = vsel %vm274, %v277, %v270
        %v282 = vsel %vm274, %v280, %v271
        %v283 = vadd.s32 %v253, 15
        %v284 = vadd.s32 %v254, 15
        %vm285 = vcmp.ge.s32.totalorder %v250, 15
        %286 = vset.pattern.permute.xlu0 9
        %287 = vperm.xlu0 %286, %v283
        %v288 = vpop.permute.xlu0 %287
        %289 = vset.pattern.permute.xlu0 9
        %290 = vperm.xlu0 %289, %v284
        %v291 = vpop.permute.xlu0 %290
        %v292 = vsel %vm285, %v288, %v281
        %v293 = vsel %vm285, %v291, %v282
        %v294 = vadd.s32 %v253, 20
        %v295 = vadd.s32 %v254, 20
        %vm296 = vcmp.ge.s32.totalorder %v250, 20
        %297 = vset.pattern.permute.xlu0 10
        %298 = vperm.xlu0 %297, %v294
        %v299 = vpop.permute.xlu0 %298
        %300 = vset.pattern.permute.xlu0 10
        %301 = vperm.xlu0 %300, %v295
        %v302 = vpop.permute.xlu0 %301
        %v303 = vsel %vm296, %v299, %v292
        %v304 = vsel %vm296, %v302, %v293
        %v305 = vadd.s32 %v253, 23
        %v306 = vadd.s32 %v254, 23
        %vm307 = vcmp.ge.s32.totalorder %v250, 23
        %308 = vset.pattern.permute.xlu0 11
        %309 = vperm.xlu0 %308, %v305
        %v310 = vpop.permute.xlu0 %309
        %311 = vset.pattern.permute.xlu0 11
        %312 = vperm.xlu0 %311, %v306
        %v313 = vpop.permute.xlu0 %312
        %v314 = vsel %vm307, %v310, %v303
        %v315 = vsel %vm307, %v313, %v304
        %v316 = vadd.s32 %v253, 30
        %v317 = vadd.s32 %v254, 30
        %vm318 = vcmp.ge.s32.totalorder %v250, 30
        %319 = vset.pattern.permute.xlu0 18
        %320 = vperm.xlu0 %319, %v316
        %v321 = vpop.permute.xlu0 %320
        %322 = vset.pattern.permute.xlu0 18
        %323 = vperm.xlu0 %322, %v317
        %v324 = vpop.permute.xlu0 %323
        %v325 = vsel %vm318, %v321, %v314
        %v326 = vsel %vm318, %v324, %v315
        %v327 = vadd.s32 %v253, 35
        %v328 = vadd.s32 %v254, 35
        %vm329 = vcmp.ge.s32.totalorder %v250, 35
        %330 = vset.pattern.permute.xlu0 19
        %331 = vperm.xlu0 %330, %v327
        %v332 = vpop.permute.xlu0 %331
        %333 = vset.pattern.permute.xlu0 19
        %334 = vperm.xlu0 %333, %v328
        %v335 = vpop.permute.xlu0 %334
        %v336 = vsel %vm329, %v332, %v325
        %v337 = vsel %vm329, %v335, %v326
        %v338 = vadd.s32 %v253, 38
        %v339 = vadd.s32 %v254, 38
        %vm340 = vcmp.ge.s32.totalorder %v250, 38
        %341 = vset.pattern.permute.xlu0 20
        %342 = vperm.xlu0 %341, %v338
        %v343 = vpop.permute.xlu0 %342
        %344 = vset.pattern.permute.xlu0 20
        %345 = vperm.xlu0 %344, %v339
        %v346 = vpop.permute.xlu0 %345
        %v347 = vsel %vm340, %v343, %v336
        %v348 = vsel %vm340, %v346, %v337
        %v349 = vadd.s32 %v253, 45
        %v350 = vadd.s32 %v254, 45
        %vm351 = vcmp.ge.s32.totalorder %v250, 45
        %352 = vset.pattern.permute.xlu0 27
        %353 = vperm.xlu0 %352, %v349
        %v354 = vpop.permute.xlu0 %353
        %355 = vset.pattern.permute.xlu0 27
        %356 = vperm.xlu0 %355, %v350
        %v357 = vpop.permute.xlu0 %356
        %v358 = vsel %vm351, %v354, %v347
        %v359 = vsel %vm351, %v357, %v348
        %v360 = vadd.s32 %v253, 50
        %v361 = vadd.s32 %v254, 50
        %vm362 = vcmp.ge.s32.totalorder %v250, 50
        %363 = vset.pattern.permute.xlu0 28
        %364 = vperm.xlu0 %363, %v360
        %v365 = vpop.permute.xlu0 %364
        %366 = vset.pattern.permute.xlu0 28
        %367 = vperm.xlu0 %366, %v361
        %v368 = vpop.permute.xlu0 %367
        %v369 = vsel %vm362, %v365, %v358
        %v370 = vsel %vm362, %v368, %v359
        %v371 = vadd.s32 %v253, 53
        %v372 = vadd.s32 %v254, 53
        %vm373 = vcmp.ge.s32.totalorder %v250, 53
        %374 = vset.pattern.permute.xlu0 29
        %375 = vperm.xlu0 %374, %v371
        %v376 = vpop.permute.xlu0 %375
        %377 = vset.pattern.permute.xlu0 29
        %378 = vperm.xlu0 %377, %v372
        %v379 = vpop.permute.xlu0 %378
        %v380 = vsel %vm373, %v376, %v369
        %v381 = vsel %vm373, %v379, %v370
        %vm382 = vcmp.eq.s32.totalorder %v250, %v380
        %vm383 = vcmp.eq.s32.totalorder %v250, %v381
        %v384 = vsel %vm382, 1, 0
        %v385 = vsel %vm383, 1, 0
        %v386 = vcvt.s32.f32 %v384
        %v387 = vcvt.s32.f32 %v385
        %v388 = vld [vmem:[#allocation5] sm:$0xff]
        %v389 = vld [vmem:[#allocation5 + $0x8] sm:$0xff]
        %v390 = vld [vmem:[#allocation5 + $0x10] sm:$0xff]
        %v391 = vld [vmem:[#allocation5 + $0x18] sm:$0xff]
        %v392 = vld [vmem:[#allocation5 + $0x20] sm:$0xff]
        %v393 = vld [vmem:[#allocation5 + $0x28] sm:$0xff]
        %v394 = vld [vmem:[#allocation5 + $0x30] sm:$0xff]
        %v395 = vld [vmem:[#allocation5 + $0x38] sm:$0xf]
        %v396 = vld [vmem:[#allocation7] sm:$0xff]
        %v397 = vld [vmem:[#allocation7 + $0x8] sm:$0xff]
        %v398 = vld [vmem:[#allocation7 + $0x10] sm:$0xff]
        %v399 = vld [vmem:[#allocation7 + $0x18] sm:$0xff]
        %v400 = vld [vmem:[#allocation7 + $0x20] sm:$0xf]
        %vm401 = vcmask 293888
        %v403 = vsel %vm401, %v247, 0
        %v406 = vsel %vm401, %v248, 0
        %vm408 = vcmask 1043456
        %v410 = vsel %vm408, %v400, 0
        %412 = vmatprep.subr.mxu0 0.0
        %413 = vmatpush1.msra.mxu0 %v396
        %414 = vmatprep.subr.mxu0 0.0
        %415 = vmatpush1.msra.mxu0 %v397
        %416 = vmatprep.subr.mxu0 0.0
        %417 = vmatpush1.msra.mxu0 %v398
        %418 = vmatprep.subr.mxu0 0.0
        %419 = vmatpush1.msra.mxu0 %v399
        %420 = vmatprep.subr.mxu0 0.0
        %421 = vmatpush1.msra.mxu0 %v410
        %422 = vmatprep.subr.mxu0 0.0
        %423 = vmatpush1.msra.mxu0 0.0
        %424 = vmatprep.subr.mxu0 0.0
        %425 = vmatpush1.msra.mxu0 0.0
        %426 = vmatprep.subr.mxu0 0.0
        %427 = vmatpush1.msra.mxu0 0.0
        %428 = vmatprep.subr.mxu0 0.0
        %429 = vmatpush1.msra.mxu0 0.0
        %430 = vmatprep.subr.mxu0 0.0
        %431 = vmatpush1.msra.mxu0 0.0
        %432 = vmatprep.subr.mxu0 0.0
        %433 = vmatpush1.msra.mxu0 0.0
        %434 = vmatprep.subr.mxu0 0.0
        %435 = vmatpush1.msra.mxu0 0.0
        %436 = vmatprep.subr.mxu0 0.0
        %437 = vmatpush1.msra.mxu0 0.0
        %438 = vmatprep.subr.mxu0 0.0
        %439 = vmatpush1.msra.mxu0 0.0
        %440 = vmatprep.subr.mxu0 0.0
        %441 = vmatpush1.msra.mxu0 0.0
        %442 = vmatprep.subr.mxu0 0.0
        %443 = vmatpush1.msra.mxu0 0.0
        %444 = vmatprep.subr.mxu0 0.0
        %445 = vmatpush1.msra.mxu0 0.0
        %446 = vmatprep.subr.mxu0 0.0
        %447 = vmatpush1.msra.mxu0 0.0
        %448 = vmatprep.subr.mxu0 0.0
        %449 = vmatpush1.msra.mxu0 0.0
        %450 = vmatprep.subr.mxu0 0.0
        %451 = vmatpush1.msra.mxu0 0.0
        %452 = vmatprep.subr.mxu0 0.0
        %453 = vmatpush1.msra.mxu0 0.0
        %454 = vmatprep.subr.mxu0 0.0
        %455 = vmatpush1.msra.mxu0 0.0
        %456 = vmatprep.subr.mxu0 0.0
        %457 = vmatpush1.msra.mxu0 0.0
        %458 = vmatprep.subr.mxu0 0.0
        %459 = vmatpush1.msra.mxu0 0.0
        %460 = vmatprep.subr.mxu0 0.0
        %461 = vmatpush1.msra.mxu0 0.0
        %462 = vmatprep.subr.mxu0 0.0
        %463 = vmatpush1.msra.mxu0 0.0
        %464 = vmatprep.subr.mxu0 0.0
        %465 = vmatpush1.msra.mxu0 0.0
        %466 = vmatprep.subr.mxu0 0.0
        %467 = vmatpush1.msra.mxu0 0.0
        %468 = vmatprep.subr.mxu0 0.0
        %469 = vmatpush1.msra.mxu0 0.0
        %470 = vmatprep.subr.mxu0 0.0
        %471 = vmatpush1.msra.mxu0 0.0
        %472 = vmatprep.subr.mxu0 0.0
        %473 = vmatpush1.msra.mxu0 0.0
        %474 = vmatprep.subr.mxu0 0.0
        %475 = vmatpush1.msra.mxu0 0.0
        %476 = vmatprep.mubr.f32.mxu0 0.0
        %477 = vmatmul.mubr.f32.gmra.mrb[0].mxu0 %v403
        %v478 = vpop.f32.mrb[0].mxu0
        %v479 = vadd.f32 0.0, %v478
        %v480 = vpop.f32.mrb[0].mxu0
        %481 = vmatprep.mubr.f32.mxu0 0.0
        %482 = vmatmul.mubr.f32.gmra.mrb[0].mxu0 %v406
        %v483 = vpop.f32.mrb[0].mxu0
        %v484 = vadd.f32 0.0, %v483
        %v485 = vpop.f32.mrb[0].mxu0
        %486 = vdwg.mxu0
        %vm487 = vcmask 490496
        %v489 = vsel %vm487, %v386, 0
        %v492 = vsel %vm487, %v387, 0
        %v495 = vsel %vm408, %v395, 0
        %497 = vmatprep.subr.mxu0 0.0
        %498 = vmatpush1.msra.mxu0 %v388
        %499 = vmatprep.subr.mxu0 0.0
        %500 = vmatpush1.msra.mxu0 %v389
        %501 = vmatprep.subr.mxu0 0.0
        %502 = vmatpush1.msra.mxu0 %v390
        %503 = vmatprep.subr.mxu0 0.0
        %504 = vmatpush1.msra.mxu0 %v391
        %505 = vmatprep.subr.mxu0 0.0
        %506 = vmatpush1.msra.mxu0 %v392
        %507 = vmatprep.subr.mxu0 0.0
        %508 = vmatpush1.msra.mxu0 %v393
        %509 = vmatprep.subr.mxu0 0.0
        %510 = vmatpush1.msra.mxu0 %v394
        %511 = vmatprep.subr.mxu0 0.0
        %512 = vmatpush1.msra.mxu0 %v495
        %513 = vmatprep.subr.mxu0 0.0
        %514 = vmatpush1.msra.mxu0 0.0
        %515 = vmatprep.subr.mxu0 0.0
        %516 = vmatpush1.msra.mxu0 0.0
        %517 = vmatprep.subr.mxu0 0.0
        %518 = vmatpush1.msra.mxu0 0.0
        %519 = vmatprep.subr.mxu0 0.0
        %520 = vmatpush1.msra.mxu0 0.0
        %521 = vmatprep.subr.mxu0 0.0
        %522 = vmatpush1.msra.mxu0 0.0
        %523 = vmatprep.subr.mxu0 0.0
        %524 = vmatpush1.msra.mxu0 0.0
        %525 = vmatprep.subr.mxu0 0.0
        %526 = vmatpush1.msra.mxu0 0.0
        %527 = vmatprep.subr.mxu0 0.0
        %528 = vmatpush1.msra.mxu0 0.0
        %529 = vmatprep.subr.mxu0 0.0
        %530 = vmatpush1.msra.mxu0 0.0
        %531 = vmatprep.subr.mxu0 0.0
        %532 = vmatpush1.msra.mxu0 0.0
        %533 = vmatprep.subr.mxu0 0.0
        %534 = vmatpush1.msra.mxu0 0.0
        %535 = vmatprep.subr.mxu0 0.0
        %536 = vmatpush1.msra.mxu0 0.0
        %537 = vmatprep.subr.mxu0 0.0
        %538 = vmatpush1.msra.mxu0 0.0
        %539 = vmatprep.subr.mxu0 0.0
        %540 = vmatpush1.msra.mxu0 0.0
        %541 = vmatprep.subr.mxu0 0.0
        %542 = vmatpush1.msra.mxu0 0.0
        %543 = vmatprep.subr.mxu0 0.0
        %544 = vmatpush1.msra.mxu0 0.0
        %545 = vmatprep.subr.mxu0 0.0
        %546 = vmatpush1.msra.mxu0 0.0
        %547 = vmatprep.subr.mxu0 0.0
        %548 = vmatpush1.msra.mxu0 0.0
        %549 = vmatprep.subr.mxu0 0.0
        %550 = vmatpush1.msra.mxu0 0.0
        %551 = vmatprep.subr.mxu0 0.0
        %552 = vmatpush1.msra.mxu0 0.0
        %553 = vmatprep.subr.mxu0 0.0
        %554 = vmatpush1.msra.mxu0 0.0
        %555 = vmatprep.subr.mxu0 0.0
        %556 = vmatpush1.msra.mxu0 0.0
        %557 = vmatprep.subr.mxu0 0.0
        %558 = vmatpush1.msra.mxu0 0.0
        %559 = vmatprep.subr.mxu0 0.0
        %560 = vmatpush1.msra.mxu0 0.0
        %561 = vmatprep.mubr.f32.mxu0 0.0
        %562 = vmatmul.mubr.f32.gmra.mrb[0].mxu0 %v489
        %v563 = vpop.f32.mrb[0].mxu0
        %v564 = vadd.f32 %v479, %v563
        %v565 = vpop.f32.mrb[0].mxu0
        %566 = vmatprep.mubr.f32.mxu0 0.0
        %567 = vmatmul.mubr.f32.gmra.mrb[0].mxu0 %v492
        %v568 = vpop.f32.mrb[0].mxu0
        %v569 = vadd.f32 %v484, %v568
        %v570 = vpop.f32.mrb[0].mxu0
        %571 = vdwg.mxu0
        %v572 = vld [vmem:[%s3] sm:$0x1]
        %v574 = vlaneseq
        %v575 = vshrl.u32 %v574, 7
        %v576 = vsub.s32 0, %v575
        %v577 = vrot.slane %v572, %v576
        %v579 = vadd.f32 %v564, %v577
        %v580 = vadd.f32 %v569, %v577
        %581 = vst [vmem:[%s244] sm:$0xff] %v579
        %582 = vst [vmem:[%s244 + $0x8] sm:$0xff] %v580
        %s583 = sand.u32 %s119, 1
        %s584 = scalar_lea.sflag [#allocation4], %s583
        %s585 = sand.u32 %s119, 1
        %s586 = smul.addr %s585, 16
        %s587 = scalar_lea.vmem [#allocation8], %s586
        // Predicated region
        $region49: #{tpu_custom_call.1} parent=35 // pred_check
          %p588 = pneg %p129
        $region50: #{tpu_custom_call.1} parent=35 // pred_check_branch
          %590 = sbr.rel (%p588) target = $region52
        $region51: #{tpu_custom_call.1} parent=35 // pred_region
          %s591 = smul.u32 2, %s22
          %s593 = ssub.s32 256, 256
          %594 = vsyncadd %s584, %s593
          %s595 = smul.addr %s591, 128
          %s596 = scalar_lea.hbm %s4, %s595
          %s597 = sshll.u32 %s587, 4
          %s598 = int_to_ptr.vmem [resolvable:$true] %s597
          %603 = dma.vmem_to_hbm [thread:$0]  %s598, 256, %s596, %s584, 128, 128, 8
        $region52: #{tpu_custom_call.1} parent=35 // pred_fallthru
          _
      $region36: #{tpu_custom_call.1} parent=5 // pred_fallthru
        _
      %p604 = scmp.le.s32.totalorder 2, %s17
      // Predicated region
      $region53: #{tpu_custom_call.1} parent=5 // pred_check
        %p605 = pneg %p604
      $region54: #{tpu_custom_call.1} parent=5 // pred_check_branch
        %607 = sbr.rel (%p605) target = $region56
      $region55: #{tpu_custom_call.1} parent=5 // pred_region
        %s608 = ssub.s32 %s17, 2
        // Predicated region
        $region57: #{tpu_custom_call.1} parent=55 // pred_check
          %p609 = pneg %p135
        $region58: #{tpu_custom_call.1} parent=55 // pred_check_branch
          %611 = sbr.rel (%p609) target = $region60
        $region59: #{tpu_custom_call.1} parent=55 // pred_region
          %s612 = sand.u32 %s120, 1
          %s613 = scalar_lea.sflag [#allocation4], %s612
          %s614 = sand.u32 %s120, 1
          %s615 = smul.addr %s614, 16
          %s616 = scalar_lea.vmem [#allocation8], %s615
          %617 = dma.done %s613, 256
        $region60: #{tpu_custom_call.1} parent=55 // pred_fallthru
          _
      $region56: #{tpu_custom_call.1} parent=5 // pred_fallthru
        _
    $region6: #{tpu_custom_call.1} parent=1 // loop_footer
      %s21 = sadd.s32 1, %s17
    $region7: #{tpu_custom_call.1} parent=1 // loop_footer_branch
      %16 = sbr.rel target = $region3
    $region8: #{tpu_custom_call.1} parent=1 // loop_exit
      _
    %618 = vsyncpa [#allocation3], 1
    %s619 = scalar_lea.sflag [#allocation3], 1
    %620 = vsyncpa %s619, 1
    %621 = vsyncpa [#allocation6], 1
    %622 = vsyncpa [#allocation4], 1
    %s623 = scalar_lea.sflag [#allocation4], 1
    %624 = vsyncpa %s623, 1

</llo_original>
